<compile_context>
chip_gen: v5e
topology: v5e:2x2
jax: 0.10.0
libtpu: 0.0.40
codegen_flags: <defaults>
</compile_context>

<pallas_src>
import functools

import jax
import jax.numpy as jnp
from jax import lax
from jax.experimental import pallas as pl
from jax.experimental.pallas import tpu as pltpu


# Keep headroom below v7x's 64 MiB physical per-TC VMEM; harmless (generous)
# on v5e/v6e which have 128 MiB.
_VMEM_LIMIT = 48 * 1024 * 1024
# Weight tile (double-buffered) budget under which a projection keeps the
# whole weight resident in VMEM (activations then stream exactly once).
_WEIGHT_RESIDENT_BUDGET = 8 * 1024 * 1024


def _pick_tile(total, preferred, align=8):
    """Largest tile <= `preferred` that divides `total` and is a multiple of
    `align`; falls back to the full extent if no such divisor exists."""
    if total <= preferred:
        return total
    if total % preferred == 0:
        return preferred
    best = total
    d = align
    while d <= preferred:
        if total % d == 0:
            best = d
        d += align
    return best


# ---------------------------------------------------------------------------
# Fused qkv projection: one matmul pass, two HBM outputs (q and kv separate)
# so the attention kernel never streams the unused Q columns along the KV axis.
# ---------------------------------------------------------------------------
def _qkv_proj_kernel(x_ref, w_ref, q_ref, kv_ref, acc_ref, *, att_dim):
    k = pl.program_id(1)

    @pl.when(k == 0)
    def _():
        acc_ref[...] = jnp.zeros_like(acc_ref)

    acc_ref[...] += jnp.dot(x_ref[...], w_ref[...],
                            preferred_element_type=jnp.float32)

    @pl.when(k == pl.num_programs(1) - 1)
    def _():
        acc = acc_ref[...]
        q_ref[...] = acc[:, :att_dim].astype(q_ref.dtype)
        kv_ref[...] = acc[:, att_dim:].astype(kv_ref.dtype)


def qkv_project(x2d, w_qkv, *, att_dim, out_dtype=jnp.bfloat16,
                tm_pref=256, tk_pref=512):
    M, K = x2d.shape
    _, n3a = w_qkv.shape
    tm = _pick_tile(M, tm_pref)
    tk = _pick_tile(K, tk_pref)
    grid = (M // tm, K // tk)
    kern = functools.partial(_qkv_proj_kernel, att_dim=att_dim)
    return pl.pallas_call(
        kern,
        out_shape=(jax.ShapeDtypeStruct((M, att_dim), out_dtype),
                   jax.ShapeDtypeStruct((M, 2 * att_dim), out_dtype)),
        grid=grid,
        in_specs=[
            pl.BlockSpec((tm, tk), lambda i, k: (i, k)),
            # Weight columns fully VMEM-resident (ViT-Base: 768x2304 bf16
            # ~3.4 MiB) -> x is streamed exactly once.
            pl.BlockSpec((tk, n3a), lambda i, k: (k, 0)),
        ],
        out_specs=(pl.BlockSpec((tm, att_dim), lambda i, k: (i, 0)),
                   pl.BlockSpec((tm, 2 * att_dim), lambda i, k: (i, 0))),
        scratch_shapes=[pltpu.VMEM((tm, n3a), jnp.float32)],
        compiler_params=pltpu.CompilerParams(
            dimension_semantics=("parallel", "arbitrary"),
            vmem_limit_bytes=_VMEM_LIMIT,
        ),
    )(x2d, w_qkv)


# ---------------------------------------------------------------------------
# Output projection (tiled matmul + bias, f32 accumulator, weight-resident
# when the weight fits VMEM).
# ---------------------------------------------------------------------------
def _linear_bias_kernel(x_ref, w_ref, b_ref, o_ref, acc_ref):
    k = pl.program_id(2)

    @pl.when(k == 0)
    def _():
        acc_ref[...] = jnp.zeros_like(acc_ref)

    acc_ref[...] += jnp.dot(x_ref[...], w_ref[...],
                            preferred_element_type=jnp.float32)

    @pl.when(k == pl.num_programs(2) - 1)
    def _():
        o_ref[...] = (acc_ref[...] + b_ref[...]).astype(o_ref.dtype)


def linear_bias(x2d, w, b, *, out_dtype=jnp.float32,
                tm_pref=256, tn_pref=256, tk_pref=512):
    M, K = x2d.shape
    _, Nout = w.shape
    tm = _pick_tile(M, tm_pref)
    if 2 * K * Nout * jnp.dtype(w.dtype).itemsize <= _WEIGHT_RESIDENT_BUDGET:
        tn, tk = Nout, K          # weight fully resident; x streamed once
    else:
        tn = _pick_tile(Nout, tn_pref)
        tk = _pick_tile(K, tk_pref)
    grid = (M // tm, Nout // tn, K // tk)
    b2d = b.reshape(1, Nout).astype(jnp.float32)
    return pl.pallas_call(
        _linear_bias_kernel,
        out_shape=jax.ShapeDtypeStruct((M, Nout), out_dtype),
        grid=grid,
        in_specs=[
            pl.BlockSpec((tm, tk), lambda i, j, k: (i, k)),
            pl.BlockSpec((tk, tn), lambda i, j, k: (k, j)),
            pl.BlockSpec((1, tn), lambda i, j, k: (0, j)),
        ],
        out_specs=pl.BlockSpec((tm, tn), lambda i, j, k: (i, j)),
        scratch_shapes=[pltpu.VMEM((tm, tn), jnp.float32)],
        compiler_params=pltpu.CompilerParams(
            dimension_semantics=("parallel", "parallel", "arbitrary"),
            vmem_limit_bytes=_VMEM_LIMIT,
        ),
    )(x2d, w, b2d)


# ---------------------------------------------------------------------------
# Flash-style multi-head attention. Q tile resident per (b, qi), KV slab
# streamed along the last ("arbitrary") grid axis. All heads per grid step
# (amortizes the ~0.35us/step overhead and shares the KV DMA across heads).
# ---------------------------------------------------------------------------
def _flash_attn_kernel(q_ref, kv_ref, o_ref, m_sc, l_sc, acc_sc, *,
                       n_heads, head_dim, tk, n_valid, need_mask):
    # q_ref  : (1, tq, A)   bf16 (softmax scale already folded into w_q)
    # kv_ref : (1, tk, 2A)  bf16, streamed along grid axis 2
    # o_ref  : (1, tq, A)   output, already in 'b n (h hd)' layout
    # m_sc   : (H, tq, 1)   f32 running max
    # l_sc   : (H, tq, 1)   f32 running denominator
    # acc_sc : (tq, A)      f32 running P@V, lane-dense across heads
    ki = pl.program_id(2)
    att_dim = n_heads * head_dim

    @pl.when(ki == 0)
    def _():
        m_sc[...] = jnp.full_like(m_sc, -jnp.inf)
        l_sc[...] = jnp.zeros_like(l_sc)
        acc_sc[...] = jnp.zeros_like(acc_sc)

    q = q_ref[0]      # (tq, A)
    kv = kv_ref[0]    # (tk, 2A)

    if need_mask:
        kv_row = ki * tk + lax.broadcasted_iota(jnp.int32, (1, tk), 1)
        kv_mask = kv_row < n_valid                       # (1, tk)

    # Contract the last dims of q and k directly (no explicit transpose).
    dn = (((1,), (1,)), ((), ()))

    for h in range(n_heads):          # static loop: all heads in one grid step
        lo, hi = h * head_dim, (h + 1) * head_dim
        q_h = q[:, lo:hi]
        k_h = kv[:, lo:hi]
        v_h = kv[:, att_dim + lo:att_dim + hi]

        s = lax.dot_general(q_h, k_h, dn,
                            preferred_element_type=jnp.float32)   # (tq, tk) f32
        if need_mask:
            s = jnp.where(kv_mask, s, -1e30)

        m_prev = m_sc[h]                                   # (tq, 1)
        l_prev = l_sc[h]
        m_new = jnp.maximum(m_prev, jnp.max(s, axis=-1, keepdims=True))
        alpha = jnp.exp(m_prev - m_new)                    # f32 exp (v5e-safe)
        p = jnp.exp(s - m_new)

        m_sc[h] = m_new
        l_sc[h] = alpha * l_prev + jnp.sum(p, axis=-1, keepdims=True)
        acc_sc[:, lo:hi] = alpha * acc_sc[:, lo:hi] + jnp.dot(
            p.astype(kv.dtype), v_h, preferred_element_type=jnp.float32)

    # TODO(synk): attn_dropout / output dropout omitted (drop_prob == 0.0).

    @pl.when(ki == pl.num_programs(2) - 1)
    def _():
        for h in range(n_heads):
            lo, hi = h * head_dim, (h + 1) * head_dim
            inv_l = pl.reciprocal(l_sc[h], approx=True)    # EUP slot, ~free
            acc_sc[:, lo:hi] = acc_sc[:, lo:hi] * inv_l
        # Single lane-dense (tq, A) store, already merged across heads.
        o_ref[0] = acc_sc[...].astype(o_ref.dtype)


def flash_mha(q, kv, *, n_heads, head_dim, n_valid, tq_pref=256, tk_pref=512):
    B, n_pad, att_dim = q.shape
    assert kv.shape == (B, n_pad, 2 * att_dim)
    tq = _pick_tile(n_pad, tq_pref)
    tk = _pick_tile(n_pad, tk_pref)
    need_mask = (n_pad != n_valid)
    kern = functools.partial(_flash_attn_kernel, n_heads=n_heads,
                             head_dim=head_dim, tk=tk, n_valid=n_valid,
                             need_mask=need_mask)
    grid = (B, n_pad // tq, n_pad // tk)
    return pl.pallas_call(
        kern,
        out_shape=jax.ShapeDtypeStruct((B, n_pad, att_dim), q.dtype),
        grid=grid,
        in_specs=[
            # Query-row tile: same block index along ki -> fetched once per qi.
            pl.BlockSpec((1, tq, att_dim), lambda b, qi, ki: (b, qi, 0)),
            # KV slab only (no unused Q columns): streamed along the last axis.
            pl.BlockSpec((1, tk, 2 * att_dim), lambda b, qi, ki: (b, ki, 0)),
        ],
        out_specs=pl.BlockSpec((1, tq, att_dim), lambda b, qi, ki: (b, qi, 0)),
        scratch_shapes=[
            pltpu.VMEM((n_heads, tq, 1), jnp.float32),     # running max
            pltpu.VMEM((n_heads, tq, 1), jnp.float32),     # running denom
            pltpu.VMEM((tq, att_dim), jnp.float32),        # lane-dense P@V acc
        ],
        compiler_params=pltpu.CompilerParams(
            dimension_semantics=("parallel", "parallel", "arbitrary"),
            vmem_limit_bytes=_VMEM_LIMIT,
        ),
    )(q, kv)


# ---------------------------------------------------------------------------
# Full Attention module forward.
# ---------------------------------------------------------------------------
def attention_forward(x, params, *, n_heads, head_dim):
    B, N, E = x.shape
    att_dim = n_heads * head_dim
    scale = float(head_dim) ** -0.5

    # Pad the sequence to a sublane multiple so real ViT lengths (e.g. 197)
    # keep (8,128)-friendly tiles; padded KV rows are masked in-kernel and
    # padded output rows are sliced off.
    n_pad = ((N + 7) // 8) * 8
    if n_pad != N:
        x = jnp.pad(x, ((0, 0), (0, n_pad - N), (0, 0)))

    # Fold the 1/sqrt(head_dim) softmax scale into the Q columns of w_qkv
    # (done once, in f32, before the bf16 cast).
    w_qkv = params["w_qkv"]
    w_qkv_scaled = jnp.concatenate(
        [w_qkv[:, :att_dim] * scale, w_qkv[:, att_dim:]], axis=1
    ).astype(jnp.bfloat16)
    w_out = params["w_out"].astype(jnp.bfloat16)
    b_out = params["b_out"].astype(jnp.float32)

    x2d = x.astype(jnp.bfloat16).reshape(B * n_pad, E)

    # One fused projection pass; q and kv land in separate HBM buffers so the
    # attention kernel never re-streams the unused Q columns.
    q2d, kv2d = qkv_project(x2d, w_qkv_scaled, att_dim=att_dim)
    q = q2d.reshape(B, n_pad, att_dim)
    kv = kv2d.reshape(B, n_pad, 2 * att_dim)

    attn = flash_mha(q, kv, n_heads=n_heads, head_dim=head_dim, n_valid=N)

    y = linear_bias(attn.reshape(B * n_pad, att_dim), w_out, b_out,
                    out_dtype=jnp.float32)
    y = y.reshape(B, n_pad, E)
    return y[:, :N, :]


def init_params(key, emb_dim, n_heads, head_dim):
    att_dim = n_heads * head_dim
    k1, k2, k3 = jax.random.split(key, 3)
    # PyTorch nn.Linear default: uniform(-1/sqrt(fan_in), 1/sqrt(fan_in)).
    bound_qkv = 1.0 / (emb_dim ** 0.5)
    bound_out = 1.0 / (att_dim ** 0.5)
    return {
        "w_qkv": jax.random.uniform(
            k1, (emb_dim, 3 * att_dim), jnp.float32, -bound_qkv, bound_qkv),
        "w_out": jax.random.uniform(
            k2, (att_dim, emb_dim), jnp.float32, -bound_out, bound_out),
        "b_out": jax.random.uniform(
            k3, (emb_dim,), jnp.float32, -bound_out, bound_out),
    }


if __name__ == "__main__":
    config = {"n_heads": 2, "head_dim": 16, "emb_dim": 32, "dropout": 0.0}
    B, N = 2, 8

    key = jax.random.PRNGKey(0)
    kx, kp = jax.random.split(key)
    x = jax.random.normal(kx, (B, N, config["emb_dim"]), dtype=jnp.float32)
    params = init_params(kp, config["emb_dim"], config["n_heads"],
                         config["head_dim"])

    out = attention_forward(
        x, params, n_heads=config["n_heads"], head_dim=config["head_dim"])
    out = jax.block_until_ready(out)

    # Reference check in plain JAX f32 (same math as the PyTorch module).
    def ref_forward(xv):
        att_dim = config["n_heads"] * config["head_dim"]
        qkv = xv @ params["w_qkv"]
        q, k, v = jnp.split(qkv, 3, axis=-1)

        def heads(t):
            return t.reshape(B, N, config["n_heads"],
                             config["head_dim"]).transpose(0, 2, 1, 3)

        q, k, v = heads(q), heads(k), heads(v)
        s = jnp.einsum("bhqd,bhkd->bhqk", q, k) * (config["head_dim"] ** -0.5)
        p = jax.nn.softmax(s, axis=-1)
        o = jnp.einsum("bhqk,bhkd->bhqd", p, v)
        o = o.transpose(0, 2, 1, 3).reshape(B, N, att_dim)
        return o @ params["w_out"] + params["b_out"]

    ref = ref_forward(x)
    assert out.shape == (B, N, config["emb_dim"])
    # Tolerance covers bf16 storage of activations/weights (f32 accumulation
    # in-kernel) and the EUP approximate reciprocal in the softmax denominator.
    assert jnp.allclose(out, ref, atol=3e-2, rtol=3e-2), "mismatch vs reference"
    print("KERNEL_OK")
</pallas_src>

<mosaic_0001>
module attributes {stable_mosaic.version = 11 : i64} {
  func.func @_qkv_proj_kernel(%arg0: i32, %arg1: i32, %arg2: memref<16x32xbf16, #tpu.memory_space<vmem>>, %arg3: memref<32x96xbf16, #tpu.memory_space<vmem>>, %arg4: memref<16x32xbf16, #tpu.memory_space<vmem>>, %arg5: memref<16x64xbf16, #tpu.memory_space<vmem>>, %arg6: memref<16x96xf32, #tpu.memory_space<vmem>>) attributes {dimension_semantics = [#tpu.dimension_semantics<parallel>, #tpu.dimension_semantics<arbitrary>], iteration_bounds = array<i64: 1, 1>, scalar_prefetch = 0 : i64, scratch_operands = 1 : i64, tpu.core_type = #tpu.core_type<tc>, window_params = [{transform_indices = @transform_0, window_bounds = array<i64: 16, 32>}, {transform_indices = @transform_1, window_bounds = array<i64: 32, 96>}, {transform_indices = @transform_2, window_bounds = array<i64: 16, 32>}, {transform_indices = @transform_3, window_bounds = array<i64: 16, 64>}]} {
    %c0_i32 = arith.constant 0 : i32
    %0 = arith.cmpi eq, %arg1, %c0_i32 : i32
    %1 = arith.extui %0 : i1 to i32
    %c0_i32_0 = arith.constant 0 : i32
    %2 = arith.cmpi ne, %1, %c0_i32_0 : i32
    scf.if %2 {
      %cst_10 = arith.constant 0.000000e+00 : f32
      %12 = vector.broadcast %cst_10 : f32 to vector<16x96xf32>
      %c0_11 = arith.constant 0 : index
      %c0_12 = arith.constant 0 : index
      %13 = vector.load %arg6[%c0_11, %c0_12] : memref<16x96xf32, #tpu.memory_space<vmem>>, vector<16x96xf32>
      tpu.vector_store %arg6[%c0_11, %c0_12], %12 {strides = array<i32>} : memref<16x96xf32, #tpu.memory_space<vmem>>, vector<16x96xf32>,
    } else {
    }
    %c0 = arith.constant 0 : index
    %c0_1 = arith.constant 0 : index
    %3 = vector.load %arg6[%c0, %c0_1] : memref<16x96xf32, #tpu.memory_space<vmem>>, vector<16x96xf32>
    %c0_2 = arith.constant 0 : index
    %c0_3 = arith.constant 0 : index
    %4 = vector.load %arg2[%c0_2, %c0_3] : memref<16x32xbf16, #tpu.memory_space<vmem>>, vector<16x32xbf16>
    %c0_4 = arith.constant 0 : index
    %c0_5 = arith.constant 0 : index
    %5 = vector.load %arg3[%c0_4, %c0_5] : memref<32x96xbf16, #tpu.memory_space<vmem>>, vector<32x96xbf16>
    %cst = arith.constant dense<0.000000e+00> : vector<16x96xf32>
    %6 = tpu.matmul %4, %5, %cst {dimension_numbers = #tpu.dot_dimension_numbers<[1], [0], [0], [1], [0, 0, 1, 1], [], []>} : vector<16x32xbf16>, vector<32x96xbf16>, vector<16x96xf32> -> vector<16x96xf32>
    %7 = arith.addf %3, %6 : vector<16x96xf32>
    %c0_6 = arith.constant 0 : index
    %c0_7 = arith.constant 0 : index
    %8 = vector.load %arg6[%c0_6, %c0_7] : memref<16x96xf32, #tpu.memory_space<vmem>>, vector<16x96xf32>
    tpu.vector_store %arg6[%c0_6, %c0_7], %7 {strides = array<i32>} : memref<16x96xf32, #tpu.memory_space<vmem>>, vector<16x96xf32>,
    %c0_i32_8 = arith.constant 0 : i32
    %9 = arith.cmpi eq, %arg1, %c0_i32_8 : i32
    %10 = arith.extui %9 : i1 to i32
    %c0_i32_9 = arith.constant 0 : i32
    %11 = arith.cmpi ne, %10, %c0_i32_9 : i32
    scf.if %11 {
      %c0_10 = arith.constant 0 : index
      %c0_11 = arith.constant 0 : index
      %12 = vector.load %arg6[%c0_10, %c0_11] : memref<16x96xf32, #tpu.memory_space<vmem>>, vector<16x96xf32>
      %13 = vector.extract_strided_slice %12 {offsets = [0, 0], sizes = [16, 32], strides = [1, 1]} : vector<16x96xf32> to vector<16x32xf32>
      %14 = arith.truncf %13 : vector<16x32xf32> to vector<16x32xbf16>
      %c0_12 = arith.constant 0 : index
      %c0_13 = arith.constant 0 : index
      %15 = vector.load %arg4[%c0_12, %c0_13] : memref<16x32xbf16, #tpu.memory_space<vmem>>, vector<16x32xbf16>
      tpu.vector_store %arg4[%c0_12, %c0_13], %14 {strides = array<i32>} : memref<16x32xbf16, #tpu.memory_space<vmem>>, vector<16x32xbf16>,
      %16 = vector.extract_strided_slice %12 {offsets = [0, 32], sizes = [16, 64], strides = [1, 1]} : vector<16x96xf32> to vector<16x64xf32>
      %17 = arith.truncf %16 : vector<16x64xf32> to vector<16x64xbf16>
      %c0_14 = arith.constant 0 : index
      %c0_15 = arith.constant 0 : index
      %18 = vector.load %arg5[%c0_14, %c0_15] : memref<16x64xbf16, #tpu.memory_space<vmem>>, vector<16x64xbf16>
      tpu.vector_store %arg5[%c0_14, %c0_15], %17 {strides = array<i32>} : memref<16x64xbf16, #tpu.memory_space<vmem>>, vector<16x64xbf16>,
    } else {
    }
    return
  }
  func.func @transform_0(%arg0: i32, %arg1: i32) -> (i32, i32) {
    %c0_i32 = arith.constant 0 : i32
    return %arg0, %arg1 : i32, i32
  }
  func.func @transform_1(%arg0: i32, %arg1: i32) -> (i32, i32) {
    %c0_i32 = arith.constant 0 : i32
    %c0_i32_0 = arith.constant 0 : i32
    return %arg1, %c0_i32 : i32, i32
  }
  func.func @transform_2(%arg0: i32, %arg1: i32) -> (i32, i32) {
    %c0_i32 = arith.constant 0 : i32
    %c0_i32_0 = arith.constant 0 : i32
    return %arg0, %c0_i32 : i32, i32
  }
  func.func @transform_3(%arg0: i32, %arg1: i32) -> (i32, i32) {
    %c0_i32 = arith.constant 0 : i32
    %c0_i32_0 = arith.constant 0 : i32
    return %arg0, %c0_i32 : i32, i32
  }
}

</mosaic_0001>

<llo_original>
// kernel: tpu_custom_call.1
$region0: #{tpu_custom_call.1}
  #allocation0 [shape = 'u32[]', space=smem, size = 0x4, offset = 0x4, fixed_abs, tag = 'smem constant byte address 0x4 - core index']
  #allocation1 [shape = 'u32[72,128]{1,0:T(1,128)}', space=vmem, size = 0x9000, scoped, tag = 'internal scratch']
  #allocation2 [shape = 'f32[16,96]{1,0:T(8,128)}', space=vmem, size = 0x2000, scoped, tag = 'scratch operand']
  %s0 = inlined_call_operand.hbm [shape: bf16[16,32], index: 0, kind: input, shape index: {}]
  %s1 = inlined_call_operand.hbm [shape: bf16[32,96], index: 1, kind: input, shape index: {}]
  %s2 = inlined_call_operand.hbm [shape: bf16[16,32], index: 2, kind: output, shape index: {0}]
  %s3 = inlined_call_operand.hbm [shape: bf16[16,64], index: 3, kind: output, shape index: {1}]
  %4 = xla_tuple %s2, %s3
  %s5 = sld [smem:[#allocation0]]
  $region42: #{tpu_custom_call.1} parent=0
    _
  %s7 = ssub.s32 1, %s5
  %s8 = scalar_select 0, %s7, %s5
  $region1: #{tpu_custom_call.1} parent=0
    #allocation3 [shape = 'u8[4096]{0}', space=vmem, size = 0x1000, scoped, tag = 'input window, operand 0, single buffered']
    #allocation4 [shape = 's32[1]{0}', space=sflag, size = 0x4, scoped, tag = 'scoped memory for tpu_custom_call.1']
    #allocation5 [shape = 's32[1]{0}', space=sflag, size = 0x4, scoped, tag = 'scoped memory for tpu_custom_call.1']
    #allocation6 [shape = 'u8[8192]{0}', space=vmem, size = 0x2000, scoped, tag = 'input window, operand 1, single buffered']
    #allocation7 [shape = 's32[1]{0}', space=sflag, size = 0x4, scoped, tag = 'scoped memory for tpu_custom_call.1']
    #allocation8 [shape = 'u8[4096]{0}', space=vmem, size = 0x1000, scoped, tag = 'output window, operand 0, single buffered']
    #allocation9 [shape = 'u8[4096]{0}', space=vmem, size = 0x1000, scoped, tag = 'output window, operand 1, single buffered']
    #allocation10 [shape = 's32[1]{0}', space=sflag, size = 0x4, scoped, tag = 'scoped memory for tpu_custom_call.1']
    %9 = vsyncpa [#allocation4], 0
    %10 = vsyncpa [#allocation7], 0
    %11 = vsyncpa [#allocation5], 0
    %12 = vsyncpa [#allocation10], 0
    // Predicated region
    $region2: #{tpu_custom_call.1} parent=1 // pred_check
      _
    $region3: #{tpu_custom_call.1} parent=1 // pred_check_branch
      %14 = sbr.rel (0) target = $region5
    $region4: #{tpu_custom_call.1} parent=1 // pred_region
      %16 = vsyncadd [#allocation4], 0
      %s17 = sshll.u32 %s0, 4
      %s18 = int_to_ptr.hbm [resolvable:$true] %s17
      %s19 = sshll.u32 [#allocation3], 4
      %s20 = int_to_ptr.vmem [resolvable:$true] %s19
      %25 = dma.hbm_to_vmem [thread:$0]  %s18, 128, %s20, [#allocation4], 64, 64, 4
    $region5: #{tpu_custom_call.1} parent=1 // pred_fallthru
      _
    // Predicated region
    $region6: #{tpu_custom_call.1} parent=1 // pred_check
      _
    $region7: #{tpu_custom_call.1} parent=1 // pred_check_branch
      %27 = sbr.rel (0) target = $region9
    $region8: #{tpu_custom_call.1} parent=1 // pred_region
      %29 = vsyncadd [#allocation7], 0
      %s30 = sshll.u32 %s1, 4
      %s31 = int_to_ptr.hbm [resolvable:$true] %s30
      %s32 = sshll.u32 [#allocation6], 4
      %s33 = int_to_ptr.vmem [resolvable:$true] %s32
      %38 = dma.hbm_to_vmem [thread:$0]  %s31, 256, %s33, [#allocation7], 64, 64, 4
    $region9: #{tpu_custom_call.1} parent=1 // pred_fallthru
      _
    // Predicated region
    $region10: #{tpu_custom_call.1} parent=1 // pred_check
      _
    $region11: #{tpu_custom_call.1} parent=1 // pred_check_branch
      %40 = sbr.rel (0) target = $region13
    $region12: #{tpu_custom_call.1} parent=1 // pred_region
      %42 = dma.done [#allocation4], 128
    $region13: #{tpu_custom_call.1} parent=1 // pred_fallthru
      _
    // Predicated region
    $region14: #{tpu_custom_call.1} parent=1 // pred_check
      _
    $region15: #{tpu_custom_call.1} parent=1 // pred_check_branch
      %44 = sbr.rel (0) target = $region17
    $region16: #{tpu_custom_call.1} parent=1 // pred_region
      %46 = dma.done [#allocation7], 256
    $region17: #{tpu_custom_call.1} parent=1 // pred_fallthru
      _
    %p48 = scmp.eq.s32.totalorder 0, 0
    // Predicated region
    $region18: #{tpu_custom_call.1} parent=1 // pred_check
      %p49 = pneg %p48
    $region19: #{tpu_custom_call.1} parent=1 // pred_check_branch
      %51 = sbr.rel (%p49) target = $region21
    $region20: #{tpu_custom_call.1} parent=1 // pred_region
      %vm52 = vcmask 785408
      %53 = vst.msk [vmem:[#allocation2] sm:$0xff] %vm52, 0.0
      %54 = vst.msk [vmem:[#allocation2 + $0x8] sm:$0xff] %vm52, 0.0
    $region21: #{tpu_custom_call.1} parent=1 // pred_fallthru
      _
    %v55 = vld [vmem:[#allocation2] sm:$0xff]
    %v56 = vld [vmem:[#allocation2 + $0x8] sm:$0xff]
    %v57 = vld [vmem:[#allocation3] sm:$0xf]
    %v58 = vld [vmem:[#allocation3 + $0x4] sm:$0xf]
    %v59 = vld [vmem:[#allocation6] sm:$0xf]
    %v60 = vld [vmem:[#allocation6 + $0x4] sm:$0xf]
    %v61 = vld [vmem:[#allocation6 + $0x8] sm:$0xf]
    %v62 = vld [vmem:[#allocation6 + $0xc] sm:$0xf]
    %v65 = vunpack.c.l.b16 %v57
    %v66 = vunpack.c.l.b16 %v58
    %v67 = vpack.c.b16 %v66, %v65
    %v72 = vunpack.c.l.b16 %v59
    %v73 = vunpack.c.l.b16 %v60
    %v74 = vunpack.c.l.b16 %v61
    %v75 = vunpack.c.l.b16 %v62
    %v76 = vpack.c.b16 %v73, %v72
    %v77 = vpack.c.b16 %v75, %v74
    %vm80 = vcmask 261120
    %v82 = vsel %vm80, %v67, 0
    %84 = vmatpush.bf16.msra.mxu0 0
    %85 = vmatpush.bf16.msra.mxu0 0
    %86 = vmatpush.bf16.msra.mxu0 0
    %87 = vmatpush.bf16.msra.mxu0 0
    %88 = vmatpush.bf16.msra.mxu0 0
    %89 = vmatpush.bf16.msra.mxu0 0
    %90 = vmatpush.bf16.msra.mxu0 %v77
    %91 = vmatpush.bf16.msra.mxu0 %v76
    %92 = vmatmul.bf16.gmra.mxu0 %v82
    %v93 = vpop.f32.mrf.mxu0
    %v94 = vadd.f32 0.0, %v93
    %v95 = vpop.f32.mrf.mxu0
    %v96 = vadd.f32 0.0, %v95
    %97 = vdwg.mxu0
    %v98 = vadd.f32 %v55, %v94
    %v99 = vadd.f32 %v56, %v96
    %vm100 = vcmask 785408
    %101 = vst.msk [vmem:[#allocation2] sm:$0xff] %vm100, %v98
    %102 = vst.msk [vmem:[#allocation2 + $0x8] sm:$0xff] %vm100, %v99
    // Predicated region
    $region22: #{tpu_custom_call.1} parent=1 // pred_check
      %p103 = pneg %p48
    $region23: #{tpu_custom_call.1} parent=1 // pred_check_branch
      %105 = sbr.rel (%p103) target = $region25
    $region24: #{tpu_custom_call.1} parent=1 // pred_region
      %v106 = vld [vmem:[#allocation2] sm:$0xff]
      %v107 = vld [vmem:[#allocation2 + $0x8] sm:$0xff]
      %v108 = vpack.c.bf16 %v106, %v106
      %v109 = vpack.c.bf16 %v107, %v107
      %vm110 = vcmask 257024
      %111 = vst.msk [vmem:[#allocation8] sm:$0xf] %vm110, %v108
      %112 = vst.msk [vmem:[#allocation8 + $0x4] sm:$0xf] %vm110, %v109
      %115 = vrot.lane.b32.xlu0 %v108, 96
      %v116 = vpop.permute.xlu0 %115
      %117 = vrot.lane.b32.xlu0 %v109, 96
      %v118 = vpop.permute.xlu0 %117
      %vm121 = vcmask 519168
      %122 = vst.msk [vmem:[#allocation9] sm:$0xf] %vm121, %v116
      %123 = vst.msk [vmem:[#allocation9 + $0x4] sm:$0xf] %vm121, %v118
    $region25: #{tpu_custom_call.1} parent=1 // pred_fallthru
      _
    // Predicated region
    $region26: #{tpu_custom_call.1} parent=1 // pred_check
      _
    $region27: #{tpu_custom_call.1} parent=1 // pred_check_branch
      %125 = sbr.rel (0) target = $region29
    $region28: #{tpu_custom_call.1} parent=1 // pred_region
      %127 = vsyncadd [#allocation5], 0
      %s128 = sshll.u32 [#allocation8], 4
      %s129 = int_to_ptr.vmem [resolvable:$true] %s128
      %s130 = sshll.u32 %s2, 4
      %s131 = int_to_ptr.hbm [resolvable:$true] %s130
      %136 = dma.vmem_to_hbm [thread:$0]  %s129, 128, %s131, [#allocation5], 64, 64, 4
    $region29: #{tpu_custom_call.1} parent=1 // pred_fallthru
      _
    // Predicated region
    $region30: #{tpu_custom_call.1} parent=1 // pred_check
      _
    $region31: #{tpu_custom_call.1} parent=1 // pred_check_branch
      %138 = sbr.rel (0) target = $region33
    $region32: #{tpu_custom_call.1} parent=1 // pred_region
      %140 = vsyncadd [#allocation10], 0
      %s141 = sshll.u32 [#allocation9], 4
      %s142 = int_to_ptr.vmem [resolvable:$true] %s141
      %s143 = sshll.u32 %s3, 4
      %s144 = int_to_ptr.hbm [resolvable:$true] %s143
      %149 = dma.vmem_to_hbm [thread:$0]  %s142, 128, %s144, [#allocation10], 64, 64, 4
    $region33: #{tpu_custom_call.1} parent=1 // pred_fallthru
      _
    // Predicated region
    $region34: #{tpu_custom_call.1} parent=1 // pred_check
      _
    $region35: #{tpu_custom_call.1} parent=1 // pred_check_branch
      %151 = sbr.rel (0) target = $region37
    $region36: #{tpu_custom_call.1} parent=1 // pred_region
      %153 = dma.done [#allocation5], 128
    $region37: #{tpu_custom_call.1} parent=1 // pred_fallthru
      _
    // Predicated region
    $region38: #{tpu_custom_call.1} parent=1 // pred_check
      _
    $region39: #{tpu_custom_call.1} parent=1 // pred_check_branch
      %155 = sbr.rel (0) target = $region41
    $region40: #{tpu_custom_call.1} parent=1 // pred_region
      %157 = dma.done [#allocation10], 128
    $region41: #{tpu_custom_call.1} parent=1 // pred_fallthru
      _
    %158 = vsyncpa [#allocation4], 1
    %159 = vsyncpa [#allocation7], 1
    %160 = vsyncpa [#allocation5], 1
    %161 = vsyncpa [#allocation10], 1

</llo_original>
